<compile_context>
chip_gen: v6e
topology: v6e:2x2x1
jax: 0.10.0
libtpu: 0.0.40
codegen_flags: <defaults>
</compile_context>

<pallas_src>
import functools

import jax
import jax.numpy as jnp
from jax.experimental import pallas as pl
from jax.experimental.pallas import tpu as pltpu


def _round_down_mult(x, m):
    return max(m, (x // m) * m)


def _softmax_parts(x):
    """e = exp(x - rowmax), logp = log_softmax(x, axis=1) for a [tn, C] f32 tile."""
    m = jnp.max(x, axis=1, keepdims=True)
    xm = x - m
    e = jnp.exp(xm)
    logp = xm - jnp.log(jnp.sum(e, axis=1, keepdims=True))
    return e, logp


def _hardmax_ce_rows(a, logp):
    """Per-row sum(D * logp) with D = hardmax(a); ties share the mass like the ref.

    One [tn, C] compare + one select; everything else is row-level [tn, 1] math.
    """
    hit = a == jnp.max(a, axis=1, keepdims=True)
    cnt = jnp.sum(hit.astype(jnp.float32), axis=1, keepdims=True)
    num = jnp.sum(jnp.where(hit, logp, 0.0), axis=1, keepdims=True)
    return num / cnt                                             # [tn, 1]


def _masked_tile_sum(rows, tile_start, n_valid):
    """Sum per-row losses, dropping rows past the real batch end (ragged last tile).

    Uses a row-level select (not multiply) so garbage/inf/NaN in out-of-bounds rows
    never reaches the partial sum.
    """
    tn = rows.shape[0]
    gid = tile_start + jax.lax.broadcasted_iota(jnp.int32, (tn, 1), 0)
    return jnp.sum(jnp.where(gid < n_valid, rows, 0.0))


def _oslce_label_kernel(n_valid, x_ref, z_ref, out_ref):
    """Integer-label path: one-hot is never materialized; a = where(col == z, e, 0)."""
    i = pl.program_id(0)
    tn, c = x_ref.shape
    x = x_ref[...].astype(jnp.float32)
    z = z_ref[...]                                               # [tn, 1] int32
    e, logp = _softmax_parts(x)
    col = jax.lax.broadcasted_iota(jnp.int32, (tn, c), 1)
    a = jnp.where(col == z, e, 0.0)                              # == one_hot * e
    rows = _hardmax_ce_rows(a, logp)
    partial = _masked_tile_sum(rows, i * tn, n_valid)
    out_ref[...] = jnp.broadcast_to(partial, out_ref.shape)


def _oslce_soft_kernel(n_valid, x_ref, t_ref, out_ref):
    """Soft-target path: targets arrive as a [tn, C] float block."""
    i = pl.program_id(0)
    tn, _ = x_ref.shape
    x = x_ref[...].astype(jnp.float32)
    t = t_ref[...].astype(jnp.float32)
    e, logp = _softmax_parts(x)
    a = t * e          # same per-row argmax / ties as t * softmax(x): s > 0 per row
    rows = _hardmax_ce_rows(a, logp)
    partial = _masked_tile_sum(rows, i * tn, n_valid)
    out_ref[...] = jnp.broadcast_to(partial, out_ref.shape)


def oslce_loss(inputs, targets, *, block_bytes=2 * 1024 * 1024, tile_rows=None):
    """Pallas implementation of OSLCELoss.forward(inputs, targets).

    block_bytes: per-grid-step f32 working-set budget for the blocked streams.
    tile_rows:   optional explicit row-tile override (rounded down to a multiple of 8).
    """
    n, c = inputs.shape
    is_labels = targets.ndim == 1 or targets.shape[1] == 1

    # f32 working-set bytes per row of the blocked streams.  The int32 [tn, 1]
    # label block is lane-padded to 128 lanes in VMEM, so count 512 B/row for it.
    if is_labels:
        row_bytes = c * 4 + 128 * 4
    else:
        row_bytes = c * 4 + c * 4

    if tile_rows is not None:
        budget_rows = _round_down_mult(int(tile_rows), 8)
    else:
        budget_rows = _round_down_mult(block_bytes // row_bytes, 8)
    # Single full-array block when the batch fits (block == full dims is always
    # legal, even for N not a multiple of 8); otherwise a multiple-of-8 row tile
    # with a ragged, in-kernel-masked last block.
    tn = n if n <= budget_rows else budget_rows
    g = pl.cdiv(n, tn)

    x = inputs
    if is_labels:
        t_arg = targets.reshape(-1).astype(jnp.int32).reshape(n, 1)
        t_spec = pl.BlockSpec((tn, 1), lambda i: (i, 0))
        kernel = functools.partial(_oslce_label_kernel, n)
        t_hbm_bytes = n * 4
    else:
        # TODO(synk): for mem-bound vocab-scale C, optionally stream targets as bf16
        # (halves the second HBM stream; near-exact ties may resolve differently).
        t_arg = targets
        t_spec = pl.BlockSpec((tn, c), lambda i: (i, 0))
        kernel = functools.partial(_oslce_soft_kernel, n)
        t_hbm_bytes = targets.size * targets.dtype.itemsize

    cost = pl.CostEstimate(
        flops=12 * n * c,
        transcendentals=n * c + n,                 # exp per element + log per row
        bytes_accessed=x.size * x.dtype.itemsize + t_hbm_bytes + g * 8 * 128 * 4,
    )

    # TODO(synk): for vocab-scale C (>~100k classes) the class dim should be tiled
    # too (two-pass online log-softmax); current blocks keep the whole row resident.
    partials = pl.pallas_call(
        kernel,
        out_shape=jax.ShapeDtypeStruct((g, 8, 128), jnp.float32),
        grid=(g,),
        in_specs=[pl.BlockSpec((tn, c), lambda i: (i, 0)), t_spec],
        out_specs=pl.BlockSpec((1, 8, 128), lambda i: (i, 0, 0)),
        compiler_params=pltpu.CompilerParams(
            # Disjoint per-tile partial-sum blocks -> fully parallel grid: v7x
            # megacore shards tiles across its 2 TensorCores; no-op on v5e/v6e.
            dimension_semantics=("parallel",),
            # 32 MiB: above v5e's 16 MiB default scoped limit, equal to the
            # v6e/v7x default, comfortably under v7x's 64 MiB physical VMEM.
            # Tiles are budgeted to ~2 MiB/step so double-buffered blocks plus
            # f32 temporaries fit with room to spare.
            vmem_limit_bytes=32 * 1024 * 1024,
        ),
        cost_estimate=cost,
    )(x, t_arg)

    # Tree-sum of per-tile partials in the wrapper (no serial in-kernel scalar
    # accumulator / summation-order drift), then the -1/N normalization.
    return -jnp.sum(partials[:, 0, 0]) / jnp.float32(n)


def oslce_loss_ref(inputs, targets):
    """Pure-JAX reference with the literal PyTorch semantics."""
    logp = jax.nn.log_softmax(inputs, axis=1)
    p = jnp.exp(logp)
    c = inputs.shape[1]
    if targets.ndim == 1 or targets.shape[1] == 1:
        targets = jax.nn.one_hot(targets.reshape(-1), c, dtype=jnp.float32)
    a = targets * p
    eqm = (a == jnp.max(a, axis=1, keepdims=True)).astype(jnp.float32)
    d = eqm / jnp.sum(eqm, axis=1, keepdims=True)
    return -jnp.sum(d * logp) / inputs.shape[0]


if __name__ == "__main__":
    key = jax.random.PRNGKey(0)
    k1, k2, k3, k4, k5, k6 = jax.random.split(key, 6)

    # 1) Integer-label path, single full-array tile.
    N, C = 8, 16
    inputs = jax.random.normal(k1, (N, C), dtype=jnp.float32)
    targets = jax.random.randint(k2, (N,), 0, C)
    loss = jax.block_until_ready(oslce_loss(inputs, targets))
    ref = oslce_loss_ref(inputs, targets)
    assert jnp.allclose(loss, ref, rtol=1e-5, atol=1e-5), (float(loss), float(ref))

    # 2) Batch not a multiple of 8: single full-dim block, no padding anywhere.
    N2 = 13
    inputs2 = jax.random.normal(k3, (N2, C), dtype=jnp.float32)
    targets2 = jax.random.randint(k4, (N2,), 0, C)
    loss2 = jax.block_until_ready(oslce_loss(inputs2, targets2))
    ref2 = oslce_loss_ref(inputs2, targets2)
    assert jnp.allclose(loss2, ref2, rtol=1e-5, atol=1e-5), (float(loss2), float(ref2))

    # 3) Multi-tile grid with a ragged last tile (exercises the in-kernel row mask
    #    and the parallel per-tile partial-sum path).
    N3 = 20
    inputs3 = jax.random.normal(k5, (N3, C), dtype=jnp.float32)
    targets3 = jax.random.randint(k6, (N3,), 0, C)
    loss3 = jax.block_until_ready(oslce_loss(inputs3, targets3, tile_rows=8))
    ref3 = oslce_loss_ref(inputs3, targets3)
    assert jnp.allclose(loss3, ref3, rtol=1e-5, atol=1e-5), (float(loss3), float(ref3))

    # 4) Soft-target path ([N, C] float targets).
    soft_t = jax.nn.softmax(jax.random.normal(k4, (N, C), dtype=jnp.float32), axis=1)
    loss4 = jax.block_until_ready(oslce_loss(inputs, soft_t))
    ref4 = oslce_loss_ref(inputs, soft_t)
    assert jnp.allclose(loss4, ref4, rtol=1e-5, atol=1e-5), (float(loss4), float(ref4))

    print("KERNEL_OK")
</pallas_src>

<mosaic_0001>
module attributes {stable_mosaic.version = 11 : i64} {
  func.func @_oslce_label_kernel(%arg0: i32, %arg1: memref<8x16xf32, #tpu.memory_space<vmem>>, %arg2: memref<8x1xi32, #tpu.memory_space<vmem>>, %arg3: memref<1x8x128xf32, #tpu.memory_space<vmem>>) attributes {dimension_semantics = [#tpu.dimension_semantics<parallel>], iteration_bounds = array<i64: 1>, scalar_prefetch = 0 : i64, scratch_operands = 0 : i64, tpu.core_type = #tpu.core_type<tc>, window_params = [{transform_indices = @transform_0, window_bounds = array<i64: 8, 16>}, {transform_indices = @transform_1, window_bounds = array<i64: 8, 1>}, {transform_indices = @transform_2, window_bounds = array<i64: 1, 8, 128>}]} {
    %c0 = arith.constant 0 : index
    %c0_0 = arith.constant 0 : index
    %0 = vector.load %arg1[%c0, %c0_0] : memref<8x16xf32, #tpu.memory_space<vmem>>, vector<8x16xf32>
    %c0_1 = arith.constant 0 : index
    %c0_2 = arith.constant 0 : index
    %1 = vector.load %arg2[%c0_1, %c0_2] : memref<8x1xi32, #tpu.memory_space<vmem>>, vector<8x1xi32>
    %cst = arith.constant dense<0xFF800000> : vector<8xf32>
    %2 = vector.multi_reduction <maximumf>, %0, %cst [1] : vector<8x16xf32> to vector<8xf32>
    %3 = vector.shape_cast %2 : vector<8xf32> to vector<8x1xf32>
    %4 = vector.broadcast %3 : vector<8x1xf32> to vector<8x16xf32>
    %5 = arith.subf %0, %4 : vector<8x16xf32>
    %6 = math.exp %5 : vector<8x16xf32>
    %cst_3 = arith.constant dense<0.000000e+00> : vector<8xf32>
    %7 = vector.multi_reduction <add>, %6, %cst_3 [1] : vector<8x16xf32> to vector<8xf32>
    %8 = vector.shape_cast %7 : vector<8xf32> to vector<8x1xf32>
    %9 = math.log %8 : vector<8x1xf32>
    %10 = vector.broadcast %9 : vector<8x1xf32> to vector<8x16xf32>
    %11 = arith.subf %5, %10 : vector<8x16xf32>
    %12 = tpu.iota {dimensions = array<i32: 1>} : vector<8x16xi32>
    %13 = vector.broadcast %1 : vector<8x1xi32> to vector<8x16xi32>
    %14 = arith.cmpi eq, %12, %13 : vector<8x16xi32>
    %cst_4 = arith.constant 0.000000e+00 : f32
    %15 = vector.broadcast %cst_4 : f32 to vector<8x16xf32>
    %16 = arith.select %14, %6, %15 : vector<8x16xi1>, vector<8x16xf32>
    %cst_5 = arith.constant dense<0xFF800000> : vector<8xf32>
    %17 = vector.multi_reduction <maximumf>, %16, %cst_5 [1] : vector<8x16xf32> to vector<8xf32>
    %18 = vector.shape_cast %17 : vector<8xf32> to vector<8x1xf32>
    %19 = vector.broadcast %18 : vector<8x1xf32> to vector<8x16xf32>
    %20 = arith.cmpf oeq, %16, %19 : vector<8x16xf32>
    %21 = arith.extui %20 : vector<8x16xi1> to vector<8x16xi32>
    %22 = arith.sitofp %21 : vector<8x16xi32> to vector<8x16xf32>
    %cst_6 = arith.constant dense<0.000000e+00> : vector<8xf32>
    %23 = vector.multi_reduction <add>, %22, %cst_6 [1] : vector<8x16xf32> to vector<8xf32>
    %24 = vector.shape_cast %23 : vector<8xf32> to vector<8x1xf32>
    %cst_7 = arith.constant 0.000000e+00 : f32
    %25 = vector.broadcast %cst_7 : f32 to vector<8x16xf32>
    %26 = arith.select %20, %11, %25 : vector<8x16xi1>, vector<8x16xf32>
    %cst_8 = arith.constant dense<0.000000e+00> : vector<8xf32>
    %27 = vector.multi_reduction <add>, %26, %cst_8 [1] : vector<8x16xf32> to vector<8xf32>
    %28 = vector.shape_cast %27 : vector<8xf32> to vector<8x1xf32>
    %29 = arith.divf %28, %24 : vector<8x1xf32>
    %c8_i32 = arith.constant 8 : i32
    %30 = arith.muli %arg0, %c8_i32 : i32
    %31 = tpu.iota {dimensions = array<i32: 0>} : vector<8x1xi32>
    %32 = vector.broadcast %30 : i32 to vector<8x1xi32>
    %33 = arith.addi %32, %31 : vector<8x1xi32>
    %c8_i32_9 = arith.constant 8 : i32
    %34 = vector.broadcast %c8_i32_9 : i32 to vector<8x1xi32>
    %35 = arith.cmpi slt, %33, %34 : vector<8x1xi32>
    %cst_10 = arith.constant 0.000000e+00 : f32
    %36 = vector.broadcast %cst_10 : f32 to vector<8x1xf32>
    %37 = arith.select %35, %29, %36 : vector<8x1xi1>, vector<8x1xf32>
    %38 = vector.shape_cast %37 : vector<8x1xf32> to vector<1x8x1xf32>
    %cst_11 = arith.constant dense<0.000000e+00> : vector<1xf32>
    %39 = vector.multi_reduction <add>, %38, %cst_11 [1, 2] : vector<1x8x1xf32> to vector<1xf32>
    %40 = vector.shape_cast %39 : vector<1xf32> to vector<1x1x1xf32>
    %41 = vector.extract %40[0, 0, 0] : f32 from vector<1x1x1xf32>
    %42 = vector.broadcast %41 : f32 to vector<1x8x128xf32>
    %c0_12 = arith.constant 0 : index
    %c0_13 = arith.constant 0 : index
    %c0_14 = arith.constant 0 : index
    %43 = vector.load %arg3[%c0_12, %c0_13, %c0_14] : memref<1x8x128xf32, #tpu.memory_space<vmem>>, vector<1x8x128xf32>
    tpu.vector_store %arg3[%c0_12, %c0_13, %c0_14], %42 {strides = array<i32>} : memref<1x8x128xf32, #tpu.memory_space<vmem>>, vector<1x8x128xf32>,
    return
  }
  func.func @transform_0(%arg0: i32) -> (i32, i32) {
    %c0_i32 = arith.constant 0 : i32
    %c0_i32_0 = arith.constant 0 : i32
    return %arg0, %c0_i32 : i32, i32
  }
  func.func @transform_1(%arg0: i32) -> (i32, i32) {
    %c0_i32 = arith.constant 0 : i32
    %c0_i32_0 = arith.constant 0 : i32
    return %arg0, %c0_i32 : i32, i32
  }
  func.func @transform_2(%arg0: i32) -> (i32, i32, i32) {
    %c0_i32 = arith.constant 0 : i32
    %c0_i32_0 = arith.constant 0 : i32
    %c0_i32_1 = arith.constant 0 : i32
    return %arg0, %c0_i32, %c0_i32_0 : i32, i32, i32
  }
}

</mosaic_0001>

<llo_original>
// kernel: tpu_custom_call.1
$region0: #{tpu_custom_call.1}
  #allocation0 [shape = 'u32[]', space=smem, size = 0x4, offset = 0x4, fixed_abs, tag = 'smem constant byte address 0x4 - core index']
  #allocation1 [shape = 'u32[144,128]{1,0:T(1,128)}', space=vmem, size = 0x12000, scoped, tag = 'internal scratch']
  %s0 = inlined_call_operand.vmem [shape: f32[8,16], index: 0, kind: input, shape index: {}]
  %s1 = inlined_call_operand.vmem [shape: s32[8,1], index: 1, kind: input, shape index: {}]
  %s2 = inlined_call_operand.hbm [shape: f32[1,8,128], index: 2, kind: output, shape index: {}]
  %s3 = sld [smem:[#allocation0]]
  $region18: #{tpu_custom_call.1} parent=0
    _
  %s5 = ssub.s32 1, %s3
  %s6 = scalar_select 0, %s5, %s3
  $region1: #{tpu_custom_call.1} parent=0
    #allocation2 [shape = 'u8[4096]{0}', space=vmem, size = 0x1000, scoped, tag = 'output window, operand 0, single buffered']
    #allocation3 [shape = 's32[1]{0}', space=sflag, size = 0x4, scoped, tag = 'scoped memory for tpu_custom_call.1']
    %7 = vsyncpa [#allocation3], 0
    // Predicated region
    $region2: #{tpu_custom_call.1} parent=1 // pred_check
      _
    $region3: #{tpu_custom_call.1} parent=1 // pred_check_branch
      %9 = sbr.rel (0) target = $region5
    $region4: #{tpu_custom_call.1} parent=1 // pred_region
      _
    $region5: #{tpu_custom_call.1} parent=1 // pred_fallthru
      _
    // Predicated region
    $region6: #{tpu_custom_call.1} parent=1 // pred_check
      _
    $region7: #{tpu_custom_call.1} parent=1 // pred_check_branch
      %11 = sbr.rel (0) target = $region9
    $region8: #{tpu_custom_call.1} parent=1 // pred_region
      _
    $region9: #{tpu_custom_call.1} parent=1 // pred_fallthru
      _
    %v12 = vld [vmem:[%s0] sm:$0xff]
    %v13 = vld [vmem:[%s1] sm:$0xff]
    %vm14 = vcmask 130048
    %v15 = vsel %vm14, %v12, -inf
    %16 = vmax.xlane.f32.xlu0 %v15
    %v17 = vpop.xlane.xlu0 %16
    %v18 = vsub.f32 %v12, %v17
    %v19 = vmul.f32 %v18, 1.442695
    %v20 = vpow.pop %v19
    %v21 = vsel %vm14, %v20, 0.0
    %22 = vadd.xlane.f32.xlu0 %v21
    %v23 = vpop.xlane.xlu0 %22
    %v24 = vlog2.pop %v23
    %v25 = vmul.f32 %v24, 0.6931472
    %v26 = vsub.f32 %v18, %v25
    %v27 = vlaneseq
    %v28 = vand.u32 %v27, 127
    %29 = vset.pattern.permute.xlu0 0
    %30 = vperm.xlu0 %29, %v13
    %v31 = vpop.permute.xlu0 %30
    %vm32 = vcmp.eq.s32.totalorder %v28, %v31
    %v33 = vsel %vm32, %v20, 0.0
    %v34 = vsel %vm14, %v33, -inf
    %35 = vmax.xlane.f32.xlu0 %v34
    %v36 = vpop.xlane.xlu0 %35
    %vm37 = vcmp.eq.f32.partialorder %v33, %v36
    %v38 = vsel %vm37, 1, 0
    %v39 = vcvt.s32.f32 %v38
    %v40 = vsel %vm14, %v39, 0.0
    %41 = vadd.xlane.f32.xlu0 %v40
    %v42 = vpop.xlane.xlu0 %41
    %v43 = vsel %vm37, %v26, 0.0
    %v44 = vsel %vm14, %v43, 0.0
    %45 = vadd.xlane.f32.xlu0 %v44
    %v46 = vpop.xlane.xlu0 %45
    %v47 = vrcp.pop %v42
    %v48 = vmul.f32 %v46, %v47
    %s49 = smul.u32 0, 8
    %v50 = vlaneseq
    %v51 = vshrl.u32 %v50, 7
    %v52 = vstv %s49
    %v53 = vadd.s32 %v52, %v51
    %vm54 = vcmp.lt.s32.totalorder %v53, 8
    %v55 = vsel %vm54, %v48, 0.0
    %vm56 = vcmask 7168
    %v57 = vsel %vm56, %v55, 0.0
    %58 = vadd.xlane.f32.xlu0 %v57
    %v59 = vpop.xlane.xlu0 %58
    %v60 = vrot.slane %v59, 4
    %v61 = vadd.f32 %v59, %v60
    %v62 = vrot.slane %v61, 2
    %v63 = vadd.f32 %v61, %v62
    %v64 = vrot.slane %v63, 1
    %v65 = vadd.f32 %v63, %v64
    %s66 = vtos %v65
    %v67 = vstv %s66
    %68 = vst [vmem:[#allocation2] sm:$0xff] %v67
    // Predicated region
    $region10: #{tpu_custom_call.1} parent=1 // pred_check
      _
    $region11: #{tpu_custom_call.1} parent=1 // pred_check_branch
      %70 = sbr.rel (0) target = $region13
    $region12: #{tpu_custom_call.1} parent=1 // pred_region
      %s72 = ssub.s32 128, 128
      %73 = vsyncadd [#allocation3], %s72
      %s75 = sshll.u32 [#allocation2], 4
      %s76 = int_to_ptr.vmem [resolvable:$true] %s75
      %78 = dma.vmem_to_hbm [thread:$0]  %s76, 128, %s2, [#allocation3]
    $region13: #{tpu_custom_call.1} parent=1 // pred_fallthru
      _
    // Predicated region
    $region14: #{tpu_custom_call.1} parent=1 // pred_check
      _
    $region15: #{tpu_custom_call.1} parent=1 // pred_check_branch
      %80 = sbr.rel (0) target = $region17
    $region16: #{tpu_custom_call.1} parent=1 // pred_region
      %81 = dma.done [#allocation3], 128
    $region17: #{tpu_custom_call.1} parent=1 // pred_fallthru
      _
    %82 = vsyncpa [#allocation3], 1

</llo_original>
